<compile_context>
chip_gen: v6e
topology: v6e:2x2x1
jax: 0.10.0
libtpu: 0.0.40
codegen_flags: <defaults>
</compile_context>

<pallas_src>
import functools

import jax
import jax.numpy as jnp
from jax.experimental import pallas as pl
from jax.experimental.pallas import tpu as pltpu

NUM_CLASSES = 10
PADDED_CLASSES = 128      # lane-dense logits / output width (multiple of 128 lanes)
NEG_BIG = -1e30           # effective -inf for masked (padded) class lanes
SUBLANE = 16              # row-tile granularity; safe for f32 and bf16 packing


def fnn_kernel(x_ref, w1_ref, b1_ref, w2_ref, b2_ref, w3_ref, b3_ref, out_ref,
               *, batch, block_rows):
    # x_ref:  (bm, 784)                 original input dtype (f32); cast in-VMEM below
    # w1_ref: (784, 64)                 compute dtype (f32 or bf16)
    # w2_ref: (64, 32)                  compute dtype
    # w3_ref: (32, 128)                 compute dtype (classes zero-padded 10..127)
    # b1/b2/b3_ref: (1, N)              float32 (added post f32 accumulation)
    # out_ref: (bm, 128)                out dtype; log_softmax over the first 10 lanes
    cdt = w1_ref.dtype

    # Cast (if any) happens here in VMEM, not as a separate HBM pass in the wrapper.
    x = x_ref[...].astype(cdt)

    # fc1 + tanh: MXU accumulates in f32; tanh goes to the EUP (free slot here).
    h1 = jnp.dot(x, w1_ref[...], preferred_element_type=jnp.float32) + b1_ref[...]
    h1 = jnp.tanh(h1)

    # fc2 + relu
    h2 = jnp.dot(h1.astype(cdt), w2_ref[...],
                 preferred_element_type=jnp.float32) + b2_ref[...]
    h2 = jnp.maximum(h2, 0.0)

    # fc3 (padded to 128 output lanes for an unmasked, lane-dense store)
    logits = jnp.dot(h2.astype(cdt), w3_ref[...],
                     preferred_element_type=jnp.float32) + b3_ref[...]

    # Ragged last batch tile: rows beyond `batch` hold undefined DMA data (the block
    # is not padded in the wrapper anymore). Neutralize them so exp/log stay finite;
    # Pallas drops their HBM writes anyway.
    row = (pl.program_id(0) * block_rows
           + jax.lax.broadcasted_iota(jnp.int32, logits.shape, 0))
    logits = jnp.where(row < batch, logits, 0.0)

    # Mask padded class lanes so they don't participate in the softmax.
    lane = jax.lax.broadcasted_iota(jnp.int32, logits.shape, 1)
    logits = jnp.where(lane < NUM_CLASSES, logits, jnp.float32(NEG_BIG))

    # Numerically stable log_softmax over the class axis (all math in f32).
    m = jnp.max(logits, axis=1, keepdims=True)
    shifted = logits - m
    lse = jnp.log(jnp.sum(jnp.exp(shifted), axis=1, keepdims=True))
    out_ref[...] = (shifted - lse).astype(out_ref.dtype)


def _round_up(n, m):
    return ((n + m - 1) // m) * m


def prepare_params(params, compute_dtype=jnp.float32):
    """One-time weight preparation (hoisted out of the per-call path):
    cast matmul operands to the compute dtype and pad the class dim to 128 lanes.
    Biases stay f32 (added after the f32 MXU accumulation)."""
    w1, b1, w2, b2, w3, b3 = params
    w1c = w1.astype(compute_dtype)
    w2c = w2.astype(compute_dtype)
    w3c = jnp.pad(w3, ((0, 0), (0, PADDED_CLASSES - NUM_CLASSES))).astype(compute_dtype)
    b1c = b1.astype(jnp.float32)
    b2c = b2.astype(jnp.float32)
    b3c = jnp.pad(b3.astype(jnp.float32),
                  ((0, 0), (0, PADDED_CLASSES - NUM_CLASSES)))
    return (w1c, b1c, w2c, b2c, w3c, b3c)


def fnn_forward(x_nchw, prepared_params, *, block_rows=1024, out_dtype=jnp.float32):
    """x_nchw: (B, 1, 28, 28). Returns (B, 10) log-probabilities in `out_dtype`.

    `prepared_params` must come from prepare_params(); the compute dtype is taken
    from the prepared weights. x is NOT cast or padded in the wrapper.
    """
    w1, b1, w2, b2, w3, b3 = prepared_params
    B = x_nchw.shape[0]
    x_flat = x_nchw.reshape(B, -1)  # same flatten order as torch .view; no dtype cast

    # Batch tile: multiple of SUBLANE, at most block_rows, and small enough that the
    # grid has >= 2 steps whenever the batch allows it (lets the batch axis shard
    # across both TensorCores on v7x).
    half = _round_up(pl.cdiv(B, 2), SUBLANE)
    bm = max(SUBLANE, min(_round_up(int(block_rows), SUBLANE), half))
    grid = (pl.cdiv(B, bm),)

    x_item = jnp.dtype(x_flat.dtype).itemsize
    w_item = jnp.dtype(w1.dtype).itemsize
    out_item = jnp.dtype(out_dtype).itemsize
    weight_bytes = ((784 * 64 + 64 * 32 + 32 * PADDED_CLASSES) * w_item
                    + (64 + 32 + PADDED_CLASSES) * 4)

    # Explicit VMEM budget: double-buffered x + out tiles, resident weights,
    # f32 intermediates, plus margin. Keeps larger bm choices safe on v5e (16 MiB
    # default scoped) and well under v7x's 64 MiB physical.
    vmem_est = (2 * (bm * 784 * x_item + bm * PADDED_CLASSES * out_item + weight_bytes)
                + bm * (64 + 32 + 2 * PADDED_CLASSES) * 4
                + (4 << 20))
    vmem_limit = int(min(max(vmem_est, 16 << 20), 48 << 20))

    cost = pl.CostEstimate(
        flops=2 * B * (784 * 64 + 64 * 32 + 32 * PADDED_CLASSES),
        transcendentals=B * (64 + PADDED_CLASSES),
        bytes_accessed=(B * 784 * x_item
                        + weight_bytes
                        + B * PADDED_CLASSES * out_item),
    )

    kernel = functools.partial(fnn_kernel, batch=B, block_rows=bm)

    out = pl.pallas_call(
        kernel,
        out_shape=jax.ShapeDtypeStruct((B, PADDED_CLASSES), out_dtype),
        grid_spec=pltpu.PrefetchScalarGridSpec(
            num_scalar_prefetch=0,
            grid=grid,
            in_specs=[
                pl.BlockSpec((bm, 784), lambda i: (i, 0)),               # x: batch-tiled
                pl.BlockSpec((784, 64), lambda i: (0, 0)),               # weights: resident
                pl.BlockSpec((1, 64), lambda i: (0, 0)),
                pl.BlockSpec((64, 32), lambda i: (0, 0)),
                pl.BlockSpec((1, 32), lambda i: (0, 0)),
                pl.BlockSpec((32, PADDED_CLASSES), lambda i: (0, 0)),
                pl.BlockSpec((1, PADDED_CLASSES), lambda i: (0, 0)),
            ],
            out_specs=pl.BlockSpec((bm, PADDED_CLASSES), lambda i: (i, 0)),
        ),
        compiler_params=pltpu.CompilerParams(
            dimension_semantics=("parallel",),   # megacore-shardable batch axis (v7x)
            vmem_limit_bytes=vmem_limit,
        ),
        cost_estimate=cost,
    )(x_flat, w1, b1, w2, b2, w3, b3)

    return out[:, :NUM_CLASSES]


def init_params(key):
    """Deterministic init matching nn.Linear shapes (weights stored transposed:
    (in, out) so the kernel does x @ W)."""
    k1, k2, k3, k4, k5, k6 = jax.random.split(key, 6)

    def linear(kw, kb, fan_in, fan_out):
        # Uniform(-1/sqrt(fan_in), 1/sqrt(fan_in)) like torch's default init.
        bound = 1.0 / jnp.sqrt(fan_in)
        w = jax.random.uniform(kw, (fan_in, fan_out), jnp.float32, -bound, bound)
        b = jax.random.uniform(kb, (1, fan_out), jnp.float32, -bound, bound)
        return w, b

    w1, b1 = linear(k1, k2, 784, 64)
    w2, b2 = linear(k3, k4, 64, 32)
    w3, b3 = linear(k5, k6, 32, 10)
    return (w1, b1, w2, b2, w3, b3)


def fnn_reference(x_nchw, params):
    """Pure-JAX f32 reference for correctness checking."""
    w1, b1, w2, b2, w3, b3 = params
    x = x_nchw.reshape(x_nchw.shape[0], -1)
    h1 = jnp.tanh(x @ w1 + b1)
    h2 = jnp.maximum(h1 @ w2 + b2, 0.0)
    logits = h2 @ w3 + b3
    return jax.nn.log_softmax(logits, axis=1)


if __name__ == "__main__":
    key = jax.random.PRNGKey(0)
    k_params, k_x = jax.random.split(key)
    params = init_params(k_params)

    # One-time (hoisted) weight preparation for both compute paths.
    params_f32 = prepare_params(params, compute_dtype=jnp.float32)
    params_bf16 = prepare_params(params, compute_dtype=jnp.bfloat16)

    # MNIST-like input: NCHW (8, 1, 28, 28) -> flattens to 784 features.
    x = jax.random.normal(k_x, (8, 1, 28, 28), dtype=jnp.float32)
    ref = fnn_reference(x, params)

    # f32 compute path: tight check against the f32 reference.
    out_f32 = jax.block_until_ready(fnn_forward(x, params_f32, out_dtype=jnp.float32))
    assert out_f32.shape == (8, 10)
    assert jnp.allclose(out_f32, ref, atol=1e-5, rtol=1e-5), "f32 mismatch vs reference"

    # bf16 matmul-operand + bf16-output path (x stays f32 in HBM, cast in-kernel).
    out_bf16 = jax.block_until_ready(fnn_forward(x, params_bf16, out_dtype=jnp.bfloat16))
    assert out_bf16.shape == (8, 10)
    assert jnp.allclose(out_bf16.astype(jnp.float32), ref, atol=1e-1, rtol=0.0), \
        "bf16 mismatch vs reference"

    # Exercise the multi-step grid and the ragged (unpadded) last batch tile.
    x2 = jax.random.normal(jax.random.PRNGKey(1), (37, 1, 28, 28), dtype=jnp.float32)
    ref2 = fnn_reference(x2, params)
    out2 = jax.block_until_ready(
        fnn_forward(x2, params_f32, block_rows=16, out_dtype=jnp.float32))
    assert out2.shape == (37, 10)
    assert jnp.allclose(out2, ref2, atol=1e-5, rtol=1e-5), "tiled f32 mismatch vs reference"
    assert jnp.all(jnp.isfinite(out2)), "non-finite values in ragged-tile path"

    print("KERNEL_OK")
</pallas_src>

<mosaic_0001>
module attributes {stable_mosaic.version = 11 : i64} {
  func.func @fnn_kernel(%arg0: i32, %arg1: memref<16x784xf32, #tpu.memory_space<vmem>>, %arg2: memref<784x64xf32, #tpu.memory_space<vmem>>, %arg3: memref<1x64xf32, #tpu.memory_space<vmem>>, %arg4: memref<64x32xf32, #tpu.memory_space<vmem>>, %arg5: memref<1x32xf32, #tpu.memory_space<vmem>>, %arg6: memref<32x128xf32, #tpu.memory_space<vmem>>, %arg7: memref<1x128xf32, #tpu.memory_space<vmem>>, %arg8: memref<16x128xf32, #tpu.memory_space<vmem>>) attributes {dimension_semantics = [#tpu.dimension_semantics<parallel>], iteration_bounds = array<i64: 1>, scalar_prefetch = 0 : i64, scratch_operands = 0 : i64, tpu.core_type = #tpu.core_type<tc>, window_params = [{transform_indices = @transform_0, window_bounds = array<i64: 16, 784>}, {pipeline_mode = #tpu.pipeline_mode<synchronous>, transform_indices = @transform_1, window_bounds = array<i64: 784, 64>}, {pipeline_mode = #tpu.pipeline_mode<synchronous>, transform_indices = @transform_2, window_bounds = array<i64: 1, 64>}, {pipeline_mode = #tpu.pipeline_mode<synchronous>, transform_indices = @transform_3, window_bounds = array<i64: 64, 32>}, {pipeline_mode = #tpu.pipeline_mode<synchronous>, transform_indices = @transform_4, window_bounds = array<i64: 1, 32>}, {pipeline_mode = #tpu.pipeline_mode<synchronous>, transform_indices = @transform_5, window_bounds = array<i64: 32, 128>}, {pipeline_mode = #tpu.pipeline_mode<synchronous>, transform_indices = @transform_6, window_bounds = array<i64: 1, 128>}, {transform_indices = @transform_7, window_bounds = array<i64: 16, 128>}]} {
    %c0 = arith.constant 0 : index
    %c0_0 = arith.constant 0 : index
    %0 = vector.load %arg1[%c0, %c0_0] : memref<16x784xf32, #tpu.memory_space<vmem>>, vector<16x784xf32>
    %c0_1 = arith.constant 0 : index
    %c0_2 = arith.constant 0 : index
    %1 = vector.load %arg2[%c0_1, %c0_2] : memref<784x64xf32, #tpu.memory_space<vmem>>, vector<784x64xf32>
    %cst = arith.constant dense<0.000000e+00> : vector<16x64xf32>
    %2 = tpu.matmul %0, %1, %cst {dimension_numbers = #tpu.dot_dimension_numbers<[1], [0], [0], [1], [0, 0, 1, 1], [], []>} : vector<16x784xf32>, vector<784x64xf32>, vector<16x64xf32> -> vector<16x64xf32>
    %c0_3 = arith.constant 0 : index
    %c0_4 = arith.constant 0 : index
    %3 = vector.load %arg3[%c0_3, %c0_4] : memref<1x64xf32, #tpu.memory_space<vmem>>, vector<1x64xf32>
    %4 = vector.broadcast %3 : vector<1x64xf32> to vector<16x64xf32>
    %5 = arith.addf %2, %4 : vector<16x64xf32>
    %6 = math.tanh %5 : vector<16x64xf32>
    %c0_5 = arith.constant 0 : index
    %c0_6 = arith.constant 0 : index
    %7 = vector.load %arg4[%c0_5, %c0_6] : memref<64x32xf32, #tpu.memory_space<vmem>>, vector<64x32xf32>
    %cst_7 = arith.constant dense<0.000000e+00> : vector<16x32xf32>
    %8 = tpu.matmul %6, %7, %cst_7 {dimension_numbers = #tpu.dot_dimension_numbers<[1], [0], [0], [1], [0, 0, 1, 1], [], []>} : vector<16x64xf32>, vector<64x32xf32>, vector<16x32xf32> -> vector<16x32xf32>
    %c0_8 = arith.constant 0 : index
    %c0_9 = arith.constant 0 : index
    %9 = vector.load %arg5[%c0_8, %c0_9] : memref<1x32xf32, #tpu.memory_space<vmem>>, vector<1x32xf32>
    %10 = vector.broadcast %9 : vector<1x32xf32> to vector<16x32xf32>
    %11 = arith.addf %8, %10 : vector<16x32xf32>
    %cst_10 = arith.constant 0.000000e+00 : f32
    %12 = vector.broadcast %cst_10 : f32 to vector<16x32xf32>
    %13 = arith.maximumf %11, %12 : vector<16x32xf32>
    %c0_11 = arith.constant 0 : index
    %c0_12 = arith.constant 0 : index
    %14 = vector.load %arg6[%c0_11, %c0_12] : memref<32x128xf32, #tpu.memory_space<vmem>>, vector<32x128xf32>
    %cst_13 = arith.constant dense<0.000000e+00> : vector<16x128xf32>
    %15 = tpu.matmul %13, %14, %cst_13 {dimension_numbers = #tpu.dot_dimension_numbers<[1], [0], [0], [1], [0, 0, 1, 1], [], []>} : vector<16x32xf32>, vector<32x128xf32>, vector<16x128xf32> -> vector<16x128xf32>
    %c0_14 = arith.constant 0 : index
    %c0_15 = arith.constant 0 : index
    %16 = vector.load %arg7[%c0_14, %c0_15] : memref<1x128xf32, #tpu.memory_space<vmem>>, vector<1x128xf32>
    %17 = vector.broadcast %16 : vector<1x128xf32> to vector<16x128xf32>
    %18 = arith.addf %15, %17 : vector<16x128xf32>
    %c16_i32 = arith.constant 16 : i32
    %19 = arith.muli %arg0, %c16_i32 : i32
    %20 = tpu.iota {dimensions = array<i32: 0>} : vector<16x128xi32>
    %21 = vector.broadcast %19 : i32 to vector<16x128xi32>
    %22 = arith.addi %21, %20 : vector<16x128xi32>
    %c8_i32 = arith.constant 8 : i32
    %23 = vector.broadcast %c8_i32 : i32 to vector<16x128xi32>
    %24 = arith.cmpi slt, %22, %23 : vector<16x128xi32>
    %cst_16 = arith.constant 0.000000e+00 : f32
    %25 = vector.broadcast %cst_16 : f32 to vector<16x128xf32>
    %26 = arith.select %24, %18, %25 : vector<16x128xi1>, vector<16x128xf32>
    %27 = tpu.iota {dimensions = array<i32: 1>} : vector<16x128xi32>
    %c10_i32 = arith.constant 10 : i32
    %28 = vector.broadcast %c10_i32 : i32 to vector<16x128xi32>
    %29 = arith.cmpi slt, %27, %28 : vector<16x128xi32>
    %cst_17 = arith.constant -1.000000e+30 : f32
    %30 = vector.broadcast %cst_17 : f32 to vector<16x128xf32>
    %31 = arith.select %29, %26, %30 : vector<16x128xi1>, vector<16x128xf32>
    %cst_18 = arith.constant dense<0xFF800000> : vector<16xf32>
    %32 = vector.multi_reduction <maximumf>, %31, %cst_18 [1] : vector<16x128xf32> to vector<16xf32>
    %33 = vector.shape_cast %32 : vector<16xf32> to vector<16x1xf32>
    %34 = vector.broadcast %33 : vector<16x1xf32> to vector<16x128xf32>
    %35 = arith.subf %31, %34 : vector<16x128xf32>
    %36 = math.exp %35 : vector<16x128xf32>
    %cst_19 = arith.constant dense<0.000000e+00> : vector<16xf32>
    %37 = vector.multi_reduction <add>, %36, %cst_19 [1] : vector<16x128xf32> to vector<16xf32>
    %38 = vector.shape_cast %37 : vector<16xf32> to vector<16x1xf32>
    %39 = math.log %38 : vector<16x1xf32>
    %40 = vector.broadcast %39 : vector<16x1xf32> to vector<16x128xf32>
    %41 = arith.subf %35, %40 : vector<16x128xf32>
    %c0_20 = arith.constant 0 : index
    %c0_21 = arith.constant 0 : index
    %42 = vector.load %arg8[%c0_20, %c0_21] : memref<16x128xf32, #tpu.memory_space<vmem>>, vector<16x128xf32>
    tpu.vector_store %arg8[%c0_20, %c0_21], %41 {strides = array<i32>} : memref<16x128xf32, #tpu.memory_space<vmem>>, vector<16x128xf32>,
    return
  }
  func.func @transform_0(%arg0: i32) -> (i32, i32) {
    %c0_i32 = arith.constant 0 : i32
    %c0_i32_0 = arith.constant 0 : i32
    return %arg0, %c0_i32 : i32, i32
  }
  func.func @transform_1(%arg0: i32) -> (i32, i32) {
    %c0_i32 = arith.constant 0 : i32
    %c0_i32_0 = arith.constant 0 : i32
    %c0_i32_1 = arith.constant 0 : i32
    return %c0_i32, %c0_i32_0 : i32, i32
  }
  func.func @transform_2(%arg0: i32) -> (i32, i32) {
    %c0_i32 = arith.constant 0 : i32
    %c0_i32_0 = arith.constant 0 : i32
    %c0_i32_1 = arith.constant 0 : i32
    return %c0_i32, %c0_i32_0 : i32, i32
  }
  func.func @transform_3(%arg0: i32) -> (i32, i32) {
    %c0_i32 = arith.constant 0 : i32
    %c0_i32_0 = arith.constant 0 : i32
    %c0_i32_1 = arith.constant 0 : i32
    return %c0_i32, %c0_i32_0 : i32, i32
  }
  func.func @transform_4(%arg0: i32) -> (i32, i32) {
    %c0_i32 = arith.constant 0 : i32
    %c0_i32_0 = arith.constant 0 : i32
    %c0_i32_1 = arith.constant 0 : i32
    return %c0_i32, %c0_i32_0 : i32, i32
  }
  func.func @transform_5(%arg0: i32) -> (i32, i32) {
    %c0_i32 = arith.constant 0 : i32
    %c0_i32_0 = arith.constant 0 : i32
    %c0_i32_1 = arith.constant 0 : i32
    return %c0_i32, %c0_i32_0 : i32, i32
  }
  func.func @transform_6(%arg0: i32) -> (i32, i32) {
    %c0_i32 = arith.constant 0 : i32
    %c0_i32_0 = arith.constant 0 : i32
    %c0_i32_1 = arith.constant 0 : i32
    return %c0_i32, %c0_i32_0 : i32, i32
  }
  func.func @transform_7(%arg0: i32) -> (i32, i32) {
    %c0_i32 = arith.constant 0 : i32
    %c0_i32_0 = arith.constant 0 : i32
    return %arg0, %c0_i32 : i32, i32
  }
}

</mosaic_0001>

<llo_original>
// kernel: tpu_custom_call.1
$region0: #{tpu_custom_call.1}
  #allocation0 [shape = 'u32[]', space=smem, size = 0x4, offset = 0x4, fixed_abs, tag = 'smem constant byte address 0x4 - core index']
  #allocation1 [shape = 'u32[144,128]{1,0:T(1,128)}', space=vmem, size = 0x12000, scoped, tag = 'internal scratch']
  %s0 = inlined_call_operand.vmem [shape: f32[8,784], index: 0, kind: input, shape index: {}]
  %s1 = inlined_call_operand.vmem [shape: f32[784,64], index: 1, kind: input, shape index: {}]
  %s2 = inlined_call_operand.vmem [shape: f32[1,64], index: 2, kind: input, shape index: {}]
  %s3 = inlined_call_operand.vmem [shape: f32[64,32], index: 3, kind: input, shape index: {}]
  %s4 = inlined_call_operand.vmem [shape: f32[1,32], index: 4, kind: input, shape index: {}]
  %s5 = inlined_call_operand.vmem [shape: f32[32,128], index: 5, kind: input, shape index: {}]
  %s6 = inlined_call_operand.vmem [shape: f32[1,128], index: 6, kind: input, shape index: {}]
  %s7 = inlined_call_operand.hbm [shape: f32[8,128], index: 7, kind: output, shape index: {}]
  %s8 = sld [smem:[#allocation0]]
  $region38: #{tpu_custom_call.1} parent=0
    _
  %s10 = ssub.s32 1, %s8
  %s11 = scalar_select 0, %s10, %s8
  $region1: #{tpu_custom_call.1} parent=0
    #allocation2 [shape = 'u8[8192]{0}', space=vmem, size = 0x2000, scoped, tag = 'output window, operand 0, single buffered']
    #allocation3 [shape = 's32[1]{0}', space=sflag, size = 0x4, scoped, tag = 'scoped memory for tpu_custom_call.1']
    %12 = vsyncpa [#allocation3], 0
    // Predicated region
    $region2: #{tpu_custom_call.1} parent=1 // pred_check
      _
    $region3: #{tpu_custom_call.1} parent=1 // pred_check_branch
      %14 = sbr.rel (0) target = $region5
    $region4: #{tpu_custom_call.1} parent=1 // pred_region
      _
    $region5: #{tpu_custom_call.1} parent=1 // pred_fallthru
      _
    // Predicated region
    $region6: #{tpu_custom_call.1} parent=1 // pred_check
      _
    $region7: #{tpu_custom_call.1} parent=1 // pred_check_branch
      %16 = sbr.rel (0) target = $region9
    $region8: #{tpu_custom_call.1} parent=1 // pred_region
      _
    $region9: #{tpu_custom_call.1} parent=1 // pred_fallthru
      _
    // Predicated region
    $region10: #{tpu_custom_call.1} parent=1 // pred_check
      _
    $region11: #{tpu_custom_call.1} parent=1 // pred_check_branch
      %18 = sbr.rel (0) target = $region13
    $region12: #{tpu_custom_call.1} parent=1 // pred_region
      _
    $region13: #{tpu_custom_call.1} parent=1 // pred_fallthru
      _
    // Predicated region
    $region14: #{tpu_custom_call.1} parent=1 // pred_check
      _
    $region15: #{tpu_custom_call.1} parent=1 // pred_check_branch
      %20 = sbr.rel (0) target = $region17
    $region16: #{tpu_custom_call.1} parent=1 // pred_region
      _
    $region17: #{tpu_custom_call.1} parent=1 // pred_fallthru
      _
    // Predicated region
    $region18: #{tpu_custom_call.1} parent=1 // pred_check
      _
    $region19: #{tpu_custom_call.1} parent=1 // pred_check_branch
      %22 = sbr.rel (0) target = $region21
    $region20: #{tpu_custom_call.1} parent=1 // pred_region
      _
    $region21: #{tpu_custom_call.1} parent=1 // pred_fallthru
      _
    // Predicated region
    $region22: #{tpu_custom_call.1} parent=1 // pred_check
      _
    $region23: #{tpu_custom_call.1} parent=1 // pred_check_branch
      %24 = sbr.rel (0) target = $region25
    $region24: #{tpu_custom_call.1} parent=1 // pred_region
      _
    $region25: #{tpu_custom_call.1} parent=1 // pred_fallthru
      _
    // Predicated region
    $region26: #{tpu_custom_call.1} parent=1 // pred_check
      _
    $region27: #{tpu_custom_call.1} parent=1 // pred_check_branch
      %26 = sbr.rel (0) target = $region29
    $region28: #{tpu_custom_call.1} parent=1 // pred_region
      _
    $region29: #{tpu_custom_call.1} parent=1 // pred_fallthru
      _
    %v27 = vld [vmem:[%s0] sm:$0xff]
    %v28 = vld [vmem:[%s0 + $0x8] sm:$0xff]
    %v29 = vld [vmem:[%s0 + $0x10] sm:$0xff]
    %v30 = vld [vmem:[%s0 + $0x18] sm:$0xff]
    %v31 = vld [vmem:[%s0 + $0x20] sm:$0xff]
    %v32 = vld [vmem:[%s0 + $0x28] sm:$0xff]
    %v33 = vld [vmem:[%s0 + $0x30] sm:$0xff]
    %v34 = vld [vmem:[%s0 + $0x38] sm:$0xff]
    %v35 = vld [vmem:[%s0 + $0x40] sm:$0xff]
    %v36 = vld [vmem:[%s0 + $0x48] sm:$0xff]
    %v37 = vld [vmem:[%s0 + $0x50] sm:$0xff]
    %v38 = vld [vmem:[%s0 + $0x58] sm:$0xff]
    %v39 = vld [vmem:[%s0 + $0x60] sm:$0xff]
    %v40 = vld [vmem:[%s0 + $0x68] sm:$0xff]
    %v41 = vld [vmem:[%s1] sm:$0xff]
    %v42 = vld [vmem:[%s1 + $0x8] sm:$0xff]
    %v43 = vld [vmem:[%s1 + $0x10] sm:$0xff]
    %v44 = vld [vmem:[%s1 + $0x18] sm:$0xff]
    %v45 = vld [vmem:[%s1 + $0x20] sm:$0xff]
    %v46 = vld [vmem:[%s1 + $0x28] sm:$0xff]
    %v47 = vld [vmem:[%s1 + $0x30] sm:$0xff]
    %v48 = vld [vmem:[%s1 + $0x38] sm:$0xff]
    %v49 = vld [vmem:[%s1 + $0x40] sm:$0xff]
    %v50 = vld [vmem:[%s1 + $0x48] sm:$0xff]
    %v51 = vld [vmem:[%s1 + $0x50] sm:$0xff]
    %v52 = vld [vmem:[%s1 + $0x58] sm:$0xff]
    %v53 = vld [vmem:[%s1 + $0x60] sm:$0xff]
    %v54 = vld [vmem:[%s1 + $0x68] sm:$0xff]
    %v55 = vld [vmem:[%s1 + $0x70] sm:$0xff]
    %v56 = vld [vmem:[%s1 + $0x78] sm:$0xff]
    %v57 = vld [vmem:[%s1 + $0x80] sm:$0xff]
    %v58 = vld [vmem:[%s1 + $0x88] sm:$0xff]
    %v59 = vld [vmem:[%s1 + $0x90] sm:$0xff]
    %v60 = vld [vmem:[%s1 + $0x98] sm:$0xff]
    %v61 = vld [vmem:[%s1 + $0xa0] sm:$0xff]
    %v62 = vld [vmem:[%s1 + $0xa8] sm:$0xff]
    %v63 = vld [vmem:[%s1 + $0xb0] sm:$0xff]
    %v64 = vld [vmem:[%s1 + $0xb8] sm:$0xff]
    %v65 = vld [vmem:[%s1 + $0xc0] sm:$0xff]
    %v66 = vld [vmem:[%s1 + $0xc8] sm:$0xff]
    %v67 = vld [vmem:[%s1 + $0xd0] sm:$0xff]
    %v68 = vld [vmem:[%s1 + $0xd8] sm:$0xff]
    %v69 = vld [vmem:[%s1 + $0xe0] sm:$0xff]
    %v70 = vld [vmem:[%s1 + $0xe8] sm:$0xff]
    %v71 = vld [vmem:[%s1 + $0xf0] sm:$0xff]
    %v72 = vld [vmem:[%s1 + $0xf8] sm:$0xff]
    %v73 = vld [vmem:[%s1 + $0x100] sm:$0xff]
    %v74 = vld [vmem:[%s1 + $0x108] sm:$0xff]
    %v75 = vld [vmem:[%s1 + $0x110] sm:$0xff]
    %v76 = vld [vmem:[%s1 + $0x118] sm:$0xff]
    %v77 = vld [vmem:[%s1 + $0x120] sm:$0xff]
    %v78 = vld [vmem:[%s1 + $0x128] sm:$0xff]
    %v79 = vld [vmem:[%s1 + $0x130] sm:$0xff]
    %v80 = vld [vmem:[%s1 + $0x138] sm:$0xff]
    %v81 = vld [vmem:[%s1 + $0x140] sm:$0xff]
    %v82 = vld [vmem:[%s1 + $0x148] sm:$0xff]
    %v83 = vld [vmem:[%s1 + $0x150] sm:$0xff]
    %v84 = vld [vmem:[%s1 + $0x158] sm:$0xff]
    %v85 = vld [vmem:[%s1 + $0x160] sm:$0xff]
    %v86 = vld [vmem:[%s1 + $0x168] sm:$0xff]
    %v87 = vld [vmem:[%s1 + $0x170] sm:$0xff]
    %v88 = vld [vmem:[%s1 + $0x178] sm:$0xff]
    %v89 = vld [vmem:[%s1 + $0x180] sm:$0xff]
    %v90 = vld [vmem:[%s1 + $0x188] sm:$0xff]
    %v91 = vld [vmem:[%s1 + $0x190] sm:$0xff]
    %v92 = vld [vmem:[%s1 + $0x198] sm:$0xff]
    %v93 = vld [vmem:[%s1 + $0x1a0] sm:$0xff]
    %v94 = vld [vmem:[%s1 + $0x1a8] sm:$0xff]
    %v95 = vld [vmem:[%s1 + $0x1b0] sm:$0xff]
    %v96 = vld [vmem:[%s1 + $0x1b8] sm:$0xff]
    %v97 = vld [vmem:[%s1 + $0x1c0] sm:$0xff]
    %v98 = vld [vmem:[%s1 + $0x1c8] sm:$0xff]
    %v99 = vld [vmem:[%s1 + $0x1d0] sm:$0xff]
    %v100 = vld [vmem:[%s1 + $0x1d8] sm:$0xff]
    %v101 = vld [vmem:[%s1 + $0x1e0] sm:$0xff]
    %v102 = vld [vmem:[%s1 + $0x1e8] sm:$0xff]
    %v103 = vld [vmem:[%s1 + $0x1f0] sm:$0xff]
    %v104 = vld [vmem:[%s1 + $0x1f8] sm:$0xff]
    %v105 = vld [vmem:[%s1 + $0x200] sm:$0xff]
    %v106 = vld [vmem:[%s1 + $0x208] sm:$0xff]
    %v107 = vld [vmem:[%s1 + $0x210] sm:$0xff]
    %v108 = vld [vmem:[%s1 + $0x218] sm:$0xff]
    %v109 = vld [vmem:[%s1 + $0x220] sm:$0xff]
    %v110 = vld [vmem:[%s1 + $0x228] sm:$0xff]
    %v111 = vld [vmem:[%s1 + $0x230] sm:$0xff]
    %v112 = vld [vmem:[%s1 + $0x238] sm:$0xff]
    %v113 = vld [vmem:[%s1 + $0x240] sm:$0xff]
    %v114 = vld [vmem:[%s1 + $0x248] sm:$0xff]
    %v115 = vld [vmem:[%s1 + $0x250] sm:$0xff]
    %v116 = vld [vmem:[%s1 + $0x258] sm:$0xff]
    %v117 = vld [vmem:[%s1 + $0x260] sm:$0xff]
    %v118 = vld [vmem:[%s1 + $0x268] sm:$0xff]
    %v119 = vld [vmem:[%s1 + $0x270] sm:$0xff]
    %v120 = vld [vmem:[%s1 + $0x278] sm:$0xff]
    %v121 = vld [vmem:[%s1 + $0x280] sm:$0xff]
    %v122 = vld [vmem:[%s1 + $0x288] sm:$0xff]
    %v123 = vld [vmem:[%s1 + $0x290] sm:$0xff]
    %v124 = vld [vmem:[%s1 + $0x298] sm:$0xff]
    %v125 = vld [vmem:[%s1 + $0x2a0] sm:$0xff]
    %v126 = vld [vmem:[%s1 + $0x2a8] sm:$0xff]
    %v127 = vld [vmem:[%s1 + $0x2b0] sm:$0xff]
    %v128 = vld [vmem:[%s1 + $0x2b8] sm:$0xff]
    %v129 = vld [vmem:[%s1 + $0x2c0] sm:$0xff]
    %v130 = vld [vmem:[%s1 + $0x2c8] sm:$0xff]
    %v131 = vld [vmem:[%s1 + $0x2d0] sm:$0xff]
    %v132 = vld [vmem:[%s1 + $0x2d8] sm:$0xff]
    %v133 = vld [vmem:[%s1 + $0x2e0] sm:$0xff]
    %v134 = vld [vmem:[%s1 + $0x2e8] sm:$0xff]
    %v135 = vld [vmem:[%s1 + $0x2f0] sm:$0xff]
    %v136 = vld [vmem:[%s1 + $0x2f8] sm:$0xff]
    %v137 = vld [vmem:[%s1 + $0x300] sm:$0xff]
    %v138 = vld [vmem:[%s1 + $0x308] sm:$0xff]
    %v139 = vld [vmem:[%s2] sm:$0x1]
    %v141 = vlaneseq
    %v142 = vshrl.u32 %v141, 7
    %v143 = vsub.s32 0, %v142
    %v144 = vrot.slane %v139, %v143
    %vm146 = vcmask 130048
    %v148 = vsel %vm146, %v33, 0
    %v151 = vsel %vm146, %v40, 0
    %153 = vmatprep.subr.mxu0 0.0
    %154 = vmatpush1.msra.mxu0 %v56
    %155 = vmatprep.subr.mxu0 0.0
    %156 = vmatpush1.msra.mxu0 %v55
    %157 = vmatprep.subr.mxu0 0.0
    %158 = vmatpush1.msra.mxu0 %v54
    %159 = vmatprep.subr.mxu0 0.0
    %160 = vmatpush1.msra.mxu0 %v53
    %161 = vmatprep.subr.mxu0 0.0
    %162 = vmatpush1.msra.mxu0 %v52
    %163 = vmatprep.subr.mxu0 0.0
    %164 = vmatpush1.msra.mxu0 %v51
    %165 = vmatprep.subr.mxu0 0.0
    %166 = vmatpush1.msra.mxu0 %v50
    %167 = vmatprep.subr.mxu0 0.0
    %168 = vmatpush1.msra.mxu0 %v49
    %169 = vmatprep.subr.mxu0 0.0
    %170 = vmatpush1.msra.mxu0 %v48
    %171 = vmatprep.subr.mxu0 0.0
    %172 = vmatpush1.msra.mxu0 %v47
    %173 = vmatprep.subr.mxu0 0.0
    %174 = vmatpush1.msra.mxu0 %v46
    %175 = vmatprep.subr.mxu0 0.0
    %176 = vmatpush1.msra.mxu0 %v45
    %177 = vmatprep.subr.mxu0 0.0
    %178 = vmatpush1.msra.mxu0 %v44
    %179 = vmatprep.subr.mxu0 0.0
    %180 = vmatpush1.msra.mxu0 %v43
    %181 = vmatprep.subr.mxu0 0.0
    %182 = vmatpush1.msra.mxu0 %v42
    %183 = vmatprep.subr.mxu0 0.0
    %184 = vmatpush1.msra.mxu0 %v41
    %185 = vmatprep.subr.mxu0 0.0
    %186 = vmatpush2.msra.mxu0 %v72
    %187 = vmatprep.subr.mxu0 0.0
    %188 = vmatpush2.msra.mxu0 %v71
    %189 = vmatprep.subr.mxu0 0.0
    %190 = vmatpush2.msra.mxu0 %v70
    %191 = vmatprep.subr.mxu0 0.0
    %192 = vmatpush2.msra.mxu0 %v69
    %193 = vmatprep.subr.mxu0 0.0
    %194 = vmatpush2.msra.mxu0 %v68
    %195 = vmatprep.subr.mxu0 0.0
    %196 = vmatpush2.msra.mxu0 %v67
    %197 = vmatprep.subr.mxu0 0.0
    %198 = vmatpush2.msra.mxu0 %v66
    %199 = vmatprep.subr.mxu0 0.0
    %200 = vmatpush2.msra.mxu0 %v65
    %201 = vmatprep.subr.mxu0 0.0
    %202 = vmatpush2.msra.mxu0 %v64
    %203 = vmatprep.subr.mxu0 0.0
    %204 = vmatpush2.msra.mxu0 %v63
    %205 = vmatprep.subr.mxu0 0.0
    %206 = vmatpush2.msra.mxu0 %v62
    %207 = vmatprep.subr.mxu0 0.0
    %208 = vmatpush2.msra.mxu0 %v61
    %209 = vmatprep.subr.mxu0 0.0
    %210 = vmatpush2.msra.mxu0 %v60
    %211 = vmatprep.subr.mxu0 0.0
    %212 = vmatpush2.msra.mxu0 %v59
    %213 = vmatprep.subr.mxu0 0.0
    %214 = vmatpush2.msra.mxu0 %v58
    %215 = vmatprep.subr.mxu0 0.0
    %216 = vmatpush2.msra.mxu0 %v57
    %217 = vmatprep.mubr.f32.mxu0 %v28
    %218 = vmatmul.mubr.f32.gmra.mxu0 %v27
    %v219 = vpop.f32.mrf.mxu0
    %v220 = vadd.f32 %v144, %v219
    %v221 = vpop.f32.mrf.mxu0
    %222 = vmatprep.mubr.f32.mxu0 %v35
    %223 = vmatmul.mubr.f32.gmra.mxu0 %v34
    %v224 = vpop.f32.mrf.mxu0
    %v225 = vadd.f32 %v144, %v224
    %v226 = vpop.f32.mrf.mxu0
    %227 = vdwg.mxu0
    %228 = vmatprep.subr.mxu0 0.0
    %229 = vmatpush1.msra.mxu0 %v88
    %230 = vmatprep.subr.mxu0 0.0
    %231 = vmatpush1.msra.mxu0 %v87
    %232 = vmatprep.subr.mxu0 0.0
    %233 = vmatpush1.msra.mxu0 %v86
    %234 = vmatprep.subr.mxu0 0.0
    %235 = vmatpush1.msra.mxu0 %v85
    %236 = vmatprep.subr.mxu0 0.0
    %237 = vmatpush1.msra.mxu0 %v84
    %238 = vmatprep.subr.mxu0 0.0
    %239 = vmatpush1.msra.mxu0 %v83
    %240 = vmatprep.subr.mxu0 0.0
    %241 = vmatpush1.msra.mxu0 %v82
    %242 = vmatprep.subr.mxu0 0.0
    %243 = vmatpush1.msra.mxu0 %v81
    %244 = vmatprep.subr.mxu0 0.0
    %245 = vmatpush1.msra.mxu0 %v80
    %246 = vmatprep.subr.mxu0 0.0
    %247 = vmatpush1.msra.mxu0 %v79
    %248 = vmatprep.subr.mxu0 0.0
    %249 = vmatpush1.msra.mxu0 %v78
    %250 = vmatprep.subr.mxu0 0.0
    %251 = vmatpush1.msra.mxu0 %v77
    %252 = vmatprep.subr.mxu0 0.0
    %253 = vmatpush1.msra.mxu0 %v76
    %254 = vmatprep.subr.mxu0 0.0
    %255 = vmatpush1.msra.mxu0 %v75
    %256 = vmatprep.subr.mxu0 0.0
    %257 = vmatpush1.msra.mxu0 %v74
    %258 = vmatprep.subr.mxu0 0.0
    %259 = vmatpush1.msra.mxu0 %v73
    %260 = vmatprep.subr.mxu0 0.0
    %261 = vmatpush2.msra.mxu0 %v104
    %262 = vmatprep.subr.mxu0 0.0
    %263 = vmatpush2.msra.mxu0 %v103
    %264 = vmatprep.subr.mxu0 0.0
    %265 = vmatpush2.msra.mxu0 %v102
    %266 = vmatprep.subr.mxu0 0.0
    %267 = vmatpush2.msra.mxu0 %v101
    %268 = vmatprep.subr.mxu0 0.0
    %269 = vmatpush2.msra.mxu0 %v100
    %270 = vmatprep.subr.mxu0 0.0
    %271 = vmatpush2.msra.mxu0 %v99
    %272 = vmatprep.subr.mxu0 0.0
    %273 = vmatpush2.msra.mxu0 %v98
    %274 = vmatprep.subr.mxu0 0.0
    %275 = vmatpush2.msra.mxu0 %v97
    %276 = vmatprep.subr.mxu0 0.0
    %277 = vmatpush2.msra.mxu0 %v96
    %278 = vmatprep.subr.mxu0 0.0
    %279 = vmatpush2.msra.mxu0 %v95
    %280 = vmatprep.subr.mxu0 0.0
    %281 = vmatpush2.msra.mxu0 %v94
    %282 = vmatprep.subr.mxu0 0.0
    %283 = vmatpush2.msra.mxu0 %v93
    %284 = vmatprep.subr.mxu0 0.0
    %285 = vmatpush2.msra.mxu0 %v92
    %286 = vmatprep.subr.mxu0 0.0
    %287 = vmatpush2.msra.mxu0 %v91
    %288 = vmatprep.subr.mxu0 0.0
    %289 = vmatpush2.msra.mxu0 %v90
    %290 = vmatprep.subr.mxu0 0.0
    %291 = vmatpush2.msra.mxu0 %v89
    %292 = vmatprep.mubr.f32.mxu0 %v30
    %293 = vmatmul.mubr.f32.gmra.mxu0 %v29
    %v294 = vpop.f32.mrf.mxu0
    %v295 = vadd.f32 %v220, %v294
    %v296 = vpop.f32.mrf.mxu0
    %297 = vmatprep.mubr.f32.mxu0 %v37
    %298 = vmatmul.mubr.f32.gmra.mxu0 %v36
    %v299 = vpop.f32.mrf.mxu0
    %v300 = vadd.f32 %v225, %v299
    %v301 = vpop.f32.mrf.mxu0
    %302 = vdwg.mxu0
    %303 = vmatprep.subr.mxu0 0.0
    %304 = vmatpush1.msra.mxu0 %v120
    %305 = vmatprep.subr.mxu0 0.0
    %306 = vmatpush1.msra.mxu0 %v119
    %307 = vmatprep.subr.mxu0 0.0
    %308 = vmatpush1.msra.mxu0 %v118
    %309 = vmatprep.subr.mxu0 0.0
    %310 = vmatpush1.msra.mxu0 %v117
    %311 = vmatprep.subr.mxu0 0.0
    %312 = vmatpush1.msra.mxu0 %v116
    %313 = vmatprep.subr.mxu0 0.0
    %314 = vmatpush1.msra.mxu0 %v115
    %315 = vmatprep.subr.mxu0 0.0
    %316 = vmatpush1.msra.mxu0 %v114
    %317 = vmatprep.subr.mxu0 0.0
    %318 = vmatpush1.msra.mxu0 %v113
    %319 = vmatprep.subr.mxu0 0.0
    %320 = vmatpush1.msra.mxu0 %v112
    %321 = vmatprep.subr.mxu0 0.0
    %322 = vmatpush1.msra.mxu0 %v111
    %323 = vmatprep.subr.mxu0 0.0
    %324 = vmatpush1.msra.mxu0 %v110
    %325 = vmatprep.subr.mxu0 0.0
    %326 = vmatpush1.msra.mxu0 %v109
    %327 = vmatprep.subr.mxu0 0.0
    %328 = vmatpush1.msra.mxu0 %v108
    %329 = vmatprep.subr.mxu0 0.0
    %330 = vmatpush1.msra.mxu0 %v107
    %331 = vmatprep.subr.mxu0 0.0
    %332 = vmatpush1.msra.mxu0 %v106
    %333 = vmatprep.subr.mxu0 0.0
    %334 = vmatpush1.msra.mxu0 %v105
    %335 = vmatprep.subr.mxu0 0.0
    %336 = vmatpush2.msra.mxu0 %v136
    %337 = vmatprep.subr.mxu0 0.0
    %338 = vmatpush2.msra.mxu0 %v135
    %339 = vmatprep.subr.mxu0 0.0
    %340 = vmatpush2.msra.mxu0 %v134
    %341 = vmatprep.subr.mxu0 0.0
    %342 = vmatpush2.msra.mxu0 %v133
    %343 = vmatprep.subr.mxu0 0.0
    %344 = vmatpush2.msra.mxu0 %v132
    %345 = vmatprep.subr.mxu0 0.0
    %346 = vmatpush2.msra.mxu0 %v131
    %347 = vmatprep.subr.mxu0 0.0
    %348 = vmatpush2.msra.mxu0 %v130
    %349 = vmatprep.subr.mxu0 0.0
    %350 = vmatpush2.msra.mxu0 %v129
    %351 = vmatprep.subr.mxu0 0.0
    %352 = vmatpush2.msra.mxu0 %v128
    %353 = vmatprep.subr.mxu0 0.0
    %354 = vmatpush2.msra.mxu0 %v127
    %355 = vmatprep.subr.mxu0 0.0
    %356 = vmatpush2.msra.mxu0 %v126
    %357 = vmatprep.subr.mxu0 0.0
    %358 = vmatpush2.msra.mxu0 %v125
    %359 = vmatprep.subr.mxu0 0.0
    %360 = vmatpush2.msra.mxu0 %v124
    %361 = vmatprep.subr.mxu0 0.0
    %362 = vmatpush2.msra.mxu0 %v123
    %363 = vmatprep.subr.mxu0 0.0
    %364 = vmatpush2.msra.mxu0 %v122
    %365 = vmatprep.subr.mxu0 0.0
    %366 = vmatpush2.msra.mxu0 %v121
    %367 = vmatprep.mubr.f32.mxu0 %v32
    %368 = vmatmul.mubr.f32.gmra.mxu0 %v31
    %v369 = vpop.f32.mrf.mxu0
    %v370 = vadd.f32 %v295, %v369
    %v371 = vpop.f32.mrf.mxu0
    %372 = vmatprep.mubr.f32.mxu0 %v39
    %373 = vmatmul.mubr.f32.gmra.mxu0 %v38
    %v374 = vpop.f32.mrf.mxu0
    %v375 = vadd.f32 %v300, %v374
    %v376 = vpop.f32.mrf.mxu0
    %377 = vdwg.mxu0
    %378 = vmatprep.subr.mxu0 0.0
    %379 = vmatpush1.msra.mxu0 0.0
    %380 = vmatprep.subr.mxu0 0.0
    %381 = vmatpush1.msra.mxu0 0.0
    %382 = vmatprep.subr.mxu0 0.0
    %383 = vmatpush1.msra.mxu0 0.0
    %384 = vmatprep.subr.mxu0 0.0
    %385 = vmatpush1.msra.mxu0 0.0
    %386 = vmatprep.subr.mxu0 0.0
    %387 = vmatpush1.msra.mxu0 0.0
    %388 = vmatprep.subr.mxu0 0.0
    %389 = vmatpush1.msra.mxu0 0.0
    %390 = vmatprep.subr.mxu0 0.0
    %391 = vmatpush1.msra.mxu0 0.0
    %392 = vmatprep.subr.mxu0 0.0
    %393 = vmatpush1.msra.mxu0 0.0
    %394 = vmatprep.subr.mxu0 0.0
    %395 = vmatpush1.msra.mxu0 0.0
    %396 = vmatprep.subr.mxu0 0.0
    %397 = vmatpush1.msra.mxu0 0.0
    %398 = vmatprep.subr.mxu0 0.0
    %399 = vmatpush1.msra.mxu0 0.0
    %400 = vmatprep.subr.mxu0 0.0
    %401 = vmatpush1.msra.mxu0 0.0
    %402 = vmatprep.subr.mxu0 0.0
    %403 = vmatpush1.msra.mxu0 0.0
    %404 = vmatprep.subr.mxu0 0.0
    %405 = vmatpush1.msra.mxu0 0.0
    %406 = vmatprep.subr.mxu0 0.0
    %407 = vmatpush1.msra.mxu0 %v138
    %408 = vmatprep.subr.mxu0 0.0
    %409 = vmatpush1.msra.mxu0 %v137
    %410 = vmatprep.subr.mxu0 0.0
    %411 = vmatpush2.msra.mxu0 0.0
    %412 = vmatprep.subr.mxu0 0.0
    %413 = vmatpush2.msra.mxu0 0.0
    %414 = vmatprep.subr.mxu0 0.0
    %415 = vmatpush2.msra.mxu0 0.0
    %416 = vmatprep.subr.mxu0 0.0
    %417 = vmatpush2.msra.mxu0 0.0
    %418 = vmatprep.subr.mxu0 0.0
    %419 = vmatpush2.msra.mxu0 0.0
    %420 = vmatprep.subr.mxu0 0.0
    %421 = vmatpush2.msra.mxu0 0.0
    %422 = vmatprep.subr.mxu0 0.0
    %423 = vmatpush2.msra.mxu0 0.0
    %424 = vmatprep.subr.mxu0 0.0
    %425 = vmatpush2.msra.mxu0 0.0
    %426 = vmatprep.subr.mxu0 0.0
    %427 = vmatpush2.msra.mxu0 0.0
    %428 = vmatprep.subr.mxu0 0.0
    %429 = vmatpush2.msra.mxu0 0.0
    %430 = vmatprep.subr.mxu0 0.0
    %431 = vmatpush2.msra.mxu0 0.0
    %432 = vmatprep.subr.mxu0 0.0
    %433 = vmatpush2.msra.mxu0 0.0
    %434 = vmatprep.subr.mxu0 0.0
    %435 = vmatpush2.msra.mxu0 0.0
    %436 = vmatprep.subr.mxu0 0.0
    %437 = vmatpush2.msra.mxu0 0.0
    %438 = vmatprep.subr.mxu0 0.0
    %439 = vmatpush2.msra.mxu0 0.0
    %440 = vmatprep.subr.mxu0 0.0
    %441 = vmatpush2.msra.mxu0 0.0
    %442 = vmatprep.mubr.f32.mxu0 0.0
    %443 = vmatmul.mubr.f32.gmra.mxu0 %v148
    %v444 = vpop.f32.mrf.mxu0
    %v445 = vadd.f32 %v370, %v444
    %v446 = vpop.f32.mrf.mxu0
    %447 = vmatprep.mubr.f32.mxu0 0.0
    %448 = vmatmul.mubr.f32.gmra.mxu0 %v151
    %v449 = vpop.f32.mrf.mxu0
    %v450 = vadd.f32 %v375, %v449
    %v451 = vpop.f32.mrf.mxu0
    %452 = vdwg.mxu0
    %v453 = vtanh.pop %v445
    %v454 = vtanh.pop %v450
    %v455 = vld [vmem:[%s3] sm:$0xff]
    %v456 = vld [vmem:[%s3 + $0x8] sm:$0xff]
    %v457 = vld [vmem:[%s3 + $0x10] sm:$0xff]
    %v458 = vld [vmem:[%s3 + $0x18] sm:$0xff]
    %v459 = vld [vmem:[%s3 + $0x20] sm:$0xff]
    %v460 = vld [vmem:[%s3 + $0x28] sm:$0xff]
    %v461 = vld [vmem:[%s3 + $0x30] sm:$0xff]
    %v462 = vld [vmem:[%s3 + $0x38] sm:$0xff]
    %v463 = vld [vmem:[%s4] sm:$0x1]
    %v465 = vlaneseq
    %v466 = vshrl.u32 %v465, 7
    %v467 = vsub.s32 0, %v466
    %v468 = vrot.slane %v463, %v467
    %vm470 = vcmask 523264
    %v472 = vsel %vm470, %v453, 0
    %v475 = vsel %vm470, %v454, 0
    %477 = vmatprep.subr.mxu0 0.0
    %478 = vmatpush1.msra.mxu0 0.0
    %479 = vmatprep.subr.mxu0 0.0
    %480 = vmatpush1.msra.mxu0 0.0
    %481 = vmatprep.subr.mxu0 0.0
    %482 = vmatpush1.msra.mxu0 0.0
    %483 = vmatprep.subr.mxu0 0.0
    %484 = vmatpush1.msra.mxu0 0.0
    %485 = vmatprep.subr.mxu0 0.0
    %486 = vmatpush1.msra.mxu0 0.0
    %487 = vmatprep.subr.mxu0 0.0
    %488 = vmatpush1.msra.mxu0 0.0
    %489 = vmatprep.subr.mxu0 0.0
    %490 = vmatpush1.msra.mxu0 0.0
    %491 = vmatprep.subr.mxu0 0.0
    %492 = vmatpush1.msra.mxu0 0.0
    %493 = vmatprep.subr.mxu0 0.0
    %494 = vmatpush1.msra.mxu0 %v462
    %495 = vmatprep.subr.mxu0 0.0
    %496 = vmatpush1.msra.mxu0 %v461
    %497 = vmatprep.subr.mxu0 0.0
    %498 = vmatpush1.msra.mxu0 %v460
    %499 = vmatprep.subr.mxu0 0.0
    %500 = vmatpush1.msra.mxu0 %v459
    %501 = vmatprep.subr.mxu0 0.0
    %502 = vmatpush1.msra.mxu0 %v458
    %503 = vmatprep.subr.mxu0 0.0
    %504 = vmatpush1.msra.mxu0 %v457
    %505 = vmatprep.subr.mxu0 0.0
    %506 = vmatpush1.msra.mxu0 %v456
    %507 = vmatprep.subr.mxu0 0.0
    %508 = vmatpush1.msra.mxu0 %v455
    %509 = vmatprep.subr.mxu0 0.0
    %510 = vmatpush2.msra.mxu0 0.0
    %511 = vmatprep.subr.mxu0 0.0
    %512 = vmatpush2.msra.mxu0 0.0
    %513 = vmatprep.subr.mxu0 0.0
    %514 = vmatpush2.msra.mxu0 0.0
    %515 = vmatprep.subr.mxu0 0.0
    %516 = vmatpush2.msra.mxu0 0.0
    %517 = vmatprep.subr.mxu0 0.0
    %518 = vmatpush2.msra.mxu0 0.0
    %519 = vmatprep.subr.mxu0 0.0
    %520 = vmatpush2.msra.mxu0 0.0
    %521 = vmatprep.subr.mxu0 0.0
    %522 = vmatpush2.msra.mxu0 0.0
    %523 = vmatprep.subr.mxu0 0.0
    %524 = vmatpush2.msra.mxu0 0.0
    %525 = vmatprep.subr.mxu0 0.0
    %526 = vmatpush2.msra.mxu0 0.0
    %527 = vmatprep.subr.mxu0 0.0
    %528 = vmatpush2.msra.mxu0 0.0
    %529 = vmatprep.subr.mxu0 0.0
    %530 = vmatpush2.msra.mxu0 0.0
    %531 = vmatprep.subr.mxu0 0.0
    %532 = vmatpush2.msra.mxu0 0.0
    %533 = vmatprep.subr.mxu0 0.0
    %534 = vmatpush2.msra.mxu0 0.0
    %535 = vmatprep.subr.mxu0 0.0
    %536 = vmatpush2.msra.mxu0 0.0
    %537 = vmatprep.subr.mxu0 0.0
    %538 = vmatpush2.msra.mxu0 0.0
    %539 = vmatprep.subr.mxu0 0.0
    %540 = vmatpush2.msra.mxu0 0.0
    %541 = vmatprep.mubr.f32.mxu0 0.0
    %542 = vmatmul.mubr.f32.gmra.mxu0 %v472
    %v543 = vpop.f32.mrf.mxu0
    %v544 = vadd.f32 %v468, %v543
    %v545 = vpop.f32.mrf.mxu0
    %546 = vmatprep.mubr.f32.mxu0 0.0
    %547 = vmatmul.mubr.f32.gmra.mxu0 %v475
    %v548 = vpop.f32.mrf.mxu0
    %v549 = vadd.f32 %v468, %v548
    %v550 = vpop.f32.mrf.mxu0
    %551 = vdwg.mxu0
    %v552 = vmax.f32 %v544, 0.0
    %v553 = vmax.f32 %v549, 0.0
    %v554 = vld [vmem:[%s5] sm:$0xff]
    %v555 = vld [vmem:[%s5 + $0x8] sm:$0xff]
    %v556 = vld [vmem:[%s5 + $0x10] sm:$0xff]
    %v557 = vld [vmem:[%s5 + $0x18] sm:$0xff]
    %v558 = vld [vmem:[%s6] sm:$0x1]
    %v560 = vlaneseq
    %v561 = vshrl.u32 %v560, 7
    %v562 = vsub.s32 0, %v561
    %v563 = vrot.slane %v558, %v562
    %vm565 = vcmask 261120
    %v567 = vsel %vm565, %v552, 0
    %v570 = vsel %vm565, %v553, 0
    %572 = vmatprep.subr.mxu0 0.0
    %573 = vmatpush1.msra.mxu0 0.0
    %574 = vmatprep.subr.mxu0 0.0
    %575 = vmatpush1.msra.mxu0 0.0
    %576 = vmatprep.subr.mxu0 0.0
    %577 = vmatpush1.msra.mxu0 0.0
    %578 = vmatprep.subr.mxu0 0.0
    %579 = vmatpush1.msra.mxu0 0.0
    %580 = vmatprep.subr.mxu0 0.0
    %581 = vmatpush1.msra.mxu0 0.0
    %582 = vmatprep.subr.mxu0 0.0
    %583 = vmatpush1.msra.mxu0 0.0
    %584 = vmatprep.subr.mxu0 0.0
    %585 = vmatpush1.msra.mxu0 0.0
    %586 = vmatprep.subr.mxu0 0.0
    %587 = vmatpush1.msra.mxu0 0.0
    %588 = vmatprep.subr.mxu0 0.0
    %589 = vmatpush1.msra.mxu0 0.0
    %590 = vmatprep.subr.mxu0 0.0
    %591 = vmatpush1.msra.mxu0 0.0
    %592 = vmatprep.subr.mxu0 0.0
    %593 = vmatpush1.msra.mxu0 0.0
    %594 = vmatprep.subr.mxu0 0.0
    %595 = vmatpush1.msra.mxu0 0.0
    %596 = vmatprep.subr.mxu0 0.0
    %597 = vmatpush1.msra.mxu0 %v557
    %598 = vmatprep.subr.mxu0 0.0
    %599 = vmatpush1.msra.mxu0 %v556
    %600 = vmatprep.subr.mxu0 0.0
    %601 = vmatpush1.msra.mxu0 %v555
    %602 = vmatprep.subr.mxu0 0.0
    %603 = vmatpush1.msra.mxu0 %v554
    %604 = vmatprep.subr.mxu0 0.0
    %605 = vmatpush2.msra.mxu0 0.0
    %606 = vmatprep.subr.mxu0 0.0
    %607 = vmatpush2.msra.mxu0 0.0
    %608 = vmatprep.subr.mxu0 0.0
    %609 = vmatpush2.msra.mxu0 0.0
    %610 = vmatprep.subr.mxu0 0.0
    %611 = vmatpush2.msra.mxu0 0.0
    %612 = vmatprep.subr.mxu0 0.0
    %613 = vmatpush2.msra.mxu0 0.0
    %614 = vmatprep.subr.mxu0 0.0
    %615 = vmatpush2.msra.mxu0 0.0
    %616 = vmatprep.subr.mxu0 0.0
    %617 = vmatpush2.msra.mxu0 0.0
    %618 = vmatprep.subr.mxu0 0.0
    %619 = vmatpush2.msra.mxu0 0.0
    %620 = vmatprep.subr.mxu0 0.0
    %621 = vmatpush2.msra.mxu0 0.0
    %622 = vmatprep.subr.mxu0 0.0
    %623 = vmatpush2.msra.mxu0 0.0
    %624 = vmatprep.subr.mxu0 0.0
    %625 = vmatpush2.msra.mxu0 0.0
    %626 = vmatprep.subr.mxu0 0.0
    %627 = vmatpush2.msra.mxu0 0.0
    %628 = vmatprep.subr.mxu0 0.0
    %629 = vmatpush2.msra.mxu0 0.0
    %630 = vmatprep.subr.mxu0 0.0
    %631 = vmatpush2.msra.mxu0 0.0
    %632 = vmatprep.subr.mxu0 0.0
    %633 = vmatpush2.msra.mxu0 0.0
    %634 = vmatprep.subr.mxu0 0.0
    %635 = vmatpush2.msra.mxu0 0.0
    %636 = vmatprep.mubr.f32.mxu0 0.0
    %637 = vmatmul.mubr.f32.gmra.mxu0 %v567
    %v638 = vpop.f32.mrf.mxu0
    %v639 = vadd.f32 %v563, %v638
    %v640 = vpop.f32.mrf.mxu0
    %641 = vmatprep.mubr.f32.mxu0 0.0
    %642 = vmatmul.mubr.f32.gmra.mxu0 %v570
    %v643 = vpop.f32.mrf.mxu0
    %v644 = vadd.f32 %v563, %v643
    %v645 = vpop.f32.mrf.mxu0
    %646 = vdwg.mxu0
    %s647 = smul.u32 0, 16
    %v648 = vlaneseq
    %v649 = vshrl.u32 %v648, 7
    %v650 = vadd.s32 %v649, 8
    %v651 = vstv %s647
    %v652 = vadd.s32 %v651, %v649
    %v653 = vadd.s32 %v651, %v650
    %vm654 = vcmp.lt.s32.totalorder %v652, 8
    %vm655 = vcmp.lt.s32.totalorder %v653, 8
    %v656 = vsel %vm654, %v639, 0.0
    %v657 = vsel %vm655, %v644, 0.0
    %v658 = vlaneseq
    %v659 = vand.u32 %v658, 127
    %vm660 = vcmp.lt.s32.totalorder %v659, 10
    %v661 = vsel %vm660, %v656, -1e+30
    %v662 = vsel %vm660, %v657, -1e+30
    %663 = vmax.xlane.f32.xlu0 %v661
    %v664 = vpop.xlane.xlu0 %663
    %665 = vmax.xlane.f32.xlu0 %v662
    %v666 = vpop.xlane.xlu0 %665
    %v667 = vsub.f32 %v661, %v664
    %v668 = vsub.f32 %v662, %v666
    %v669 = vmul.f32 %v667, 1.442695
    %v670 = vpow.pop %v669
    %v671 = vmul.f32 %v668, 1.442695
    %v672 = vpow.pop %v671
    %673 = vadd.xlane.f32.xlu0 %v670
    %v674 = vpop.xlane.xlu0 %673
    %675 = vadd.xlane.f32.xlu0 %v672
    %v676 = vpop.xlane.xlu0 %675
    %v677 = vlog2.pop %v674
    %v678 = vmul.f32 %v677, 0.6931472
    %v679 = vlog2.pop %v676
    %v680 = vmul.f32 %v679, 0.6931472
    %v681 = vsub.f32 %v667, %v678
    %v682 = vsub.f32 %v668, %v680
    %683 = vst [vmem:[#allocation2] sm:$0xff] %v681
    %684 = vst [vmem:[#allocation2 + $0x8] sm:$0xff] %v682
    // Predicated region
    $region30: #{tpu_custom_call.1} parent=1 // pred_check
      _
    $region31: #{tpu_custom_call.1} parent=1 // pred_check_branch
      %686 = sbr.rel (0) target = $region33
    $region32: #{tpu_custom_call.1} parent=1 // pred_region
      %s688 = ssub.s32 256, 128
      %689 = vsyncadd [#allocation3], %s688
      %s690 = sshll.u32 [#allocation2], 4
      %s691 = int_to_ptr.vmem [resolvable:$true] %s690
      %696 = dma.vmem_to_hbm [thread:$0]  %s691, 128, %s7, [#allocation3], 128, 128, 8
    $region33: #{tpu_custom_call.1} parent=1 // pred_fallthru
      _
    // Predicated region
    $region34: #{tpu_custom_call.1} parent=1 // pred_check
      _
    $region35: #{tpu_custom_call.1} parent=1 // pred_check_branch
      %698 = sbr.rel (0) target = $region37
    $region36: #{tpu_custom_call.1} parent=1 // pred_region
      %699 = dma.done [#allocation3], 256
    $region37: #{tpu_custom_call.1} parent=1 // pred_fallthru
      _
    %700 = vsyncpa [#allocation3], 1

</llo_original>
